<compile_context>
chip_gen: v7x
topology: tpu7x:2x2x1
jax: 0.10.0
libtpu: 0.0.40
codegen_flags: <defaults>
</compile_context>

<pallas_src>
import jax
import jax.numpy as jnp
from jax.experimental import pallas as pl
from jax.experimental.pallas import tpu as pltpu


def _round_up(x, m):
    return (x + m - 1) // m * m


# ----------------------------------------------------------------------------
# Pallas kernel: fused shared-encoder + task-head forward for one M tile
# ----------------------------------------------------------------------------
def _mtl_forward_kernel(x_ref, w_enc_ref, b_enc_ref, w_head_ref, b_head_ref,
                        o_ref):
    # x_ref:      (TILE_M, D_in)  bf16   token tile
    # w_enc_ref:  (D_in, H)       bf16   shared encoder weight (resident)
    # b_enc_ref:  (1, H)          f32    shared encoder bias   (resident)
    # w_head_ref: (H, C_pad)      bf16   task head weight(s)   (resident)
    # b_head_ref: (1, C_pad)      f32    task head bias(es)    (resident)
    # o_ref:      (TILE_M, C_pad) f32    logits tile (lane-dense, C_pad%128==0)

    # Encoder matmul: bf16 operands on the MXU, f32 accumulation.
    h = jnp.dot(x_ref[...], w_enc_ref[...],
                preferred_element_type=jnp.float32)
    # Bias + ReLU in f32 on the VPU (v5e has no bf16 VPU path).
    h = jnp.maximum(h + b_enc_ref[...], 0.0)

    # Task-head matmul: cast the activation to bf16 for the MXU, keep f32 acc.
    logits = jnp.dot(h.astype(jnp.bfloat16), w_head_ref[...],
                     preferred_element_type=jnp.float32)
    o_ref[...] = logits + b_head_ref[...]


def _mtl_forward(x2d, w_enc_bf, b_enc, w_head_bf, b_head, *, tile_m=256):
    """Tiled, pipelined fused forward.

    Tiles the token dim M; weights/biases use a constant block index so they
    are DMA'd from HBM once and stay resident in VMEM across the grid.
    Head columns are pre-padded to a multiple of 128 (lane-dense stores).
    """
    M, D_in = x2d.shape
    H = w_enc_bf.shape[1]
    C_pad = w_head_bf.shape[1]
    assert C_pad % 128 == 0, "head columns must be pre-padded to 128 lanes"

    # Tile over M: multiple of 16 (bf16 sublane packing), capped by the
    # (padded) problem size so tiny inputs don't blow up.
    tm = min(tile_m, _round_up(M, 16))
    M_pad = _round_up(M, tm)

    x_bf = x2d.astype(jnp.bfloat16)
    if M_pad != M:
        x_bf = jnp.pad(x_bf, ((0, M_pad - M), (0, 0)))

    grid = (M_pad // tm,)

    cost = pl.CostEstimate(
        flops=2 * M_pad * (D_in * H + H * C_pad),
        transcendentals=0,
        bytes_accessed=(x_bf.size * 2 + w_enc_bf.size * 2 + w_head_bf.size * 2
                        + b_enc.size * 4 + b_head.size * 4
                        + M_pad * C_pad * 4),
    )

    # NOTE: for very large D_in (>~2k) add a K-reduction grid axis with an
    # f32 VMEM accumulator (pl.when init/finalize); unnecessary at these sizes
    # since (TILE_M, D_in) + (D_in, H) comfortably fit VMEM.
    out = pl.pallas_call(
        _mtl_forward_kernel,
        out_shape=jax.ShapeDtypeStruct((M_pad, C_pad), jnp.float32),
        grid=grid,
        in_specs=[
            pl.BlockSpec((tm, D_in), lambda i: (i, 0)),    # x tile (pipelined)
            pl.BlockSpec((D_in, H), lambda i: (0, 0)),     # W_enc (resident)
            pl.BlockSpec((1, H), lambda i: (0, 0)),        # b_enc (resident)
            pl.BlockSpec((H, C_pad), lambda i: (0, 0)),    # W_head (resident)
            pl.BlockSpec((1, C_pad), lambda i: (0, 0)),    # b_head (resident)
        ],
        out_specs=pl.BlockSpec((tm, C_pad), lambda i: (i, 0)),
        compiler_params=pltpu.CompilerParams(
            dimension_semantics=("parallel",),   # megacore sharding on v7x
            vmem_limit_bytes=48 << 20,           # fits v7x 64 MiB VMEM
        ),
        cost_estimate=cost,
    )(x_bf, w_enc_bf, b_enc, w_head_bf, b_head)

    return out[:M]


# ----------------------------------------------------------------------------
# JAX-side MultiTaskModel (mirrors the nn.Module dispatch structure)
# ----------------------------------------------------------------------------
class MultiTaskModel:
    """model_dict: {task_name: (w_head, b_head)}; shared encoder (w_enc, b_enc).

    Weights are pre-cast to bf16 and head columns pre-padded to multiples of
    128 lanes at construction time (one-time cost).
    """

    def __init__(self, model_dict, shared_ptt_encoder, tile_m=256):
        self.tile_m = tile_m
        w_enc, b_enc = shared_ptt_encoder
        self._w_enc_bf = w_enc.astype(jnp.bfloat16)
        self._b_enc = b_enc.astype(jnp.float32)

        # Per-task (lane-dense padded) heads + a packed multi-head weight so
        # the shared encoder can be amortized across all tasks in one call.
        self._heads = {}
        packed_w, packed_b = [], []
        self._packed_slices = {}
        off = 0
        for name, (w, b) in model_dict.items():
            c = w.shape[1]
            c_pad = _round_up(c, 128)
            w_p = jnp.pad(w, ((0, 0), (0, c_pad - c))).astype(jnp.bfloat16)
            b_p = jnp.pad(b, ((0, 0), (0, c_pad - c))).astype(jnp.float32)
            self._heads[name] = (w_p, b_p, c)
            packed_w.append(w_p)
            packed_b.append(b_p)
            self._packed_slices[name] = (off, c)
            off += c_pad
        self._packed_w = jnp.concatenate(packed_w, axis=1)
        self._packed_b = jnp.concatenate(packed_b, axis=1)

    # --- original semantics: dispatch on task_name (static, ModuleDict-like) -
    def forward(self, x, **kwargs):
        task_name = kwargs.pop("task_name")
        w_head, b_head, c = self._heads[task_name]
        B, S, D = x.shape
        out = _mtl_forward(x.reshape(B * S, D), self._w_enc_bf, self._b_enc,
                           w_head, b_head, tile_m=self.tile_m)
        return out[:, :c].reshape(B, S, c)

    __call__ = forward

    # --- encoder amortization: one encoder pass feeds every task head --------
    def forward_all(self, x):
        B, S, D = x.shape
        out = _mtl_forward(x.reshape(B * S, D), self._w_enc_bf, self._b_enc,
                           self._packed_w, self._packed_b, tile_m=self.tile_m)
        return {name: out[:, off:off + c].reshape(B, S, c)
                for name, (off, c) in self._packed_slices.items()}


# ----------------------------------------------------------------------------
# Deterministic parameter init + smoke test
# ----------------------------------------------------------------------------
def _init_params(key, d_in, hidden, task_num_labels):
    keys = jax.random.split(key, 2 + 2 * len(task_num_labels))
    w_enc = jax.random.normal(keys[0], (d_in, hidden), jnp.float32) * 0.02
    b_enc = jax.random.normal(keys[1], (1, hidden), jnp.float32) * 0.02
    heads = {}
    for i, (name, n_labels) in enumerate(task_num_labels.items()):
        w = jax.random.normal(keys[2 + 2 * i], (hidden, n_labels),
                              jnp.float32) * 0.02
        b = jax.random.normal(keys[3 + 2 * i], (1, n_labels),
                              jnp.float32) * 0.02
        heads[name] = (w, b)
    return (w_enc, b_enc), heads


if __name__ == "__main__":
    key = jax.random.PRNGKey(0)
    k_x, k_p = jax.random.split(key)

    B, S, D_IN, HIDDEN = 2, 8, 32, 32
    task_num_labels = {"mnli": 8, "qqp": 16}

    shared_encoder, heads = _init_params(k_p, D_IN, HIDDEN, task_num_labels)
    model = MultiTaskModel(model_dict=heads, shared_ptt_encoder=shared_encoder)

    x = jax.random.normal(k_x, (B, S, D_IN), jnp.float32)

    # Per-task dispatch (static task_name, same as nn.ModuleDict lookup).
    out_mnli = model(x, task_name="mnli")
    out_qqp = model(x, task_name="qqp")
    jax.block_until_ready(out_mnli)
    jax.block_until_ready(out_qqp)

    # Amortized path: one shared-encoder pass for all task heads.
    out_all = model.forward_all(x)
    jax.block_until_ready(out_all["mnli"])
    jax.block_until_ready(out_all["qqp"])

    # Reference check in plain JAX (f32 math; kernel uses bf16 MXU operands
    # with f32 accumulation, so tolerances are relaxed accordingly).
    def ref(task_name):
        w_enc, b_enc = shared_encoder
        w_head, b_head = heads[task_name]
        h = jnp.maximum(x.reshape(B * S, D_IN) @ w_enc + b_enc, 0.0)
        return (h @ w_head + b_head).reshape(B, S, -1)

    assert out_mnli.shape == (B, S, task_num_labels["mnli"])
    assert out_qqp.shape == (B, S, task_num_labels["qqp"])
    assert jnp.allclose(out_mnli, ref("mnli"), atol=1e-2, rtol=1e-2)
    assert jnp.allclose(out_qqp, ref("qqp"), atol=1e-2, rtol=1e-2)
    assert jnp.allclose(out_all["mnli"], out_mnli, atol=1e-5, rtol=1e-5)
    assert jnp.allclose(out_all["qqp"], out_qqp, atol=1e-5, rtol=1e-5)

    print("KERNEL_OK")
</pallas_src>

<mosaic_0001>
module attributes {stable_mosaic.version = 11 : i64} {
  func.func @_mtl_forward_kernel(%arg0: i32, %arg1: memref<16x32xbf16, #tpu.memory_space<vmem>>, %arg2: memref<32x32xbf16, #tpu.memory_space<vmem>>, %arg3: memref<1x32xf32, #tpu.memory_space<vmem>>, %arg4: memref<32x128xbf16, #tpu.memory_space<vmem>>, %arg5: memref<1x128xf32, #tpu.memory_space<vmem>>, %arg6: memref<16x128xf32, #tpu.memory_space<vmem>>) attributes {dimension_semantics = [#tpu.dimension_semantics<parallel>], iteration_bounds = array<i64: 1>, scalar_prefetch = 0 : i64, scratch_operands = 0 : i64, tpu.core_type = #tpu.core_type<tc>, window_params = [{transform_indices = @transform_0, window_bounds = array<i64: 16, 32>}, {pipeline_mode = #tpu.pipeline_mode<synchronous>, transform_indices = @transform_1, window_bounds = array<i64: 32, 32>}, {pipeline_mode = #tpu.pipeline_mode<synchronous>, transform_indices = @transform_2, window_bounds = array<i64: 1, 32>}, {pipeline_mode = #tpu.pipeline_mode<synchronous>, transform_indices = @transform_3, window_bounds = array<i64: 32, 128>}, {pipeline_mode = #tpu.pipeline_mode<synchronous>, transform_indices = @transform_4, window_bounds = array<i64: 1, 128>}, {transform_indices = @transform_5, window_bounds = array<i64: 16, 128>}]} {
    %c0 = arith.constant 0 : index
    %c0_0 = arith.constant 0 : index
    %0 = vector.load %arg1[%c0, %c0_0] : memref<16x32xbf16, #tpu.memory_space<vmem>>, vector<16x32xbf16>
    %c0_1 = arith.constant 0 : index
    %c0_2 = arith.constant 0 : index
    %1 = vector.load %arg2[%c0_1, %c0_2] : memref<32x32xbf16, #tpu.memory_space<vmem>>, vector<32x32xbf16>
    %cst = arith.constant dense<0.000000e+00> : vector<16x32xf32>
    %2 = tpu.matmul %0, %1, %cst {dimension_numbers = #tpu.dot_dimension_numbers<[1], [0], [0], [1], [0, 0, 1, 1], [], []>} : vector<16x32xbf16>, vector<32x32xbf16>, vector<16x32xf32> -> vector<16x32xf32>
    %c0_3 = arith.constant 0 : index
    %c0_4 = arith.constant 0 : index
    %3 = vector.load %arg3[%c0_3, %c0_4] : memref<1x32xf32, #tpu.memory_space<vmem>>, vector<1x32xf32>
    %4 = vector.broadcast %3 : vector<1x32xf32> to vector<16x32xf32>
    %5 = arith.addf %2, %4 : vector<16x32xf32>
    %cst_5 = arith.constant 0.000000e+00 : f32
    %6 = vector.broadcast %cst_5 : f32 to vector<16x32xf32>
    %7 = arith.maximumf %5, %6 : vector<16x32xf32>
    %8 = arith.truncf %7 : vector<16x32xf32> to vector<16x32xbf16>
    %c0_6 = arith.constant 0 : index
    %c0_7 = arith.constant 0 : index
    %9 = vector.load %arg4[%c0_6, %c0_7] : memref<32x128xbf16, #tpu.memory_space<vmem>>, vector<32x128xbf16>
    %cst_8 = arith.constant dense<0.000000e+00> : vector<16x128xf32>
    %10 = tpu.matmul %8, %9, %cst_8 {dimension_numbers = #tpu.dot_dimension_numbers<[1], [0], [0], [1], [0, 0, 1, 1], [], []>} : vector<16x32xbf16>, vector<32x128xbf16>, vector<16x128xf32> -> vector<16x128xf32>
    %c0_9 = arith.constant 0 : index
    %c0_10 = arith.constant 0 : index
    %11 = vector.load %arg5[%c0_9, %c0_10] : memref<1x128xf32, #tpu.memory_space<vmem>>, vector<1x128xf32>
    %12 = vector.broadcast %11 : vector<1x128xf32> to vector<16x128xf32>
    %13 = arith.addf %10, %12 : vector<16x128xf32>
    %c0_11 = arith.constant 0 : index
    %c0_12 = arith.constant 0 : index
    %14 = vector.load %arg6[%c0_11, %c0_12] : memref<16x128xf32, #tpu.memory_space<vmem>>, vector<16x128xf32>
    tpu.vector_store %arg6[%c0_11, %c0_12], %13 {strides = array<i32>} : memref<16x128xf32, #tpu.memory_space<vmem>>, vector<16x128xf32>,
    return
  }
  func.func @transform_0(%arg0: i32) -> (i32, i32) {
    %c0_i32 = arith.constant 0 : i32
    %c0_i32_0 = arith.constant 0 : i32
    return %arg0, %c0_i32 : i32, i32
  }
  func.func @transform_1(%arg0: i32) -> (i32, i32) {
    %c0_i32 = arith.constant 0 : i32
    %c0_i32_0 = arith.constant 0 : i32
    %c0_i32_1 = arith.constant 0 : i32
    return %c0_i32, %c0_i32_0 : i32, i32
  }
  func.func @transform_2(%arg0: i32) -> (i32, i32) {
    %c0_i32 = arith.constant 0 : i32
    %c0_i32_0 = arith.constant 0 : i32
    %c0_i32_1 = arith.constant 0 : i32
    return %c0_i32, %c0_i32_0 : i32, i32
  }
  func.func @transform_3(%arg0: i32) -> (i32, i32) {
    %c0_i32 = arith.constant 0 : i32
    %c0_i32_0 = arith.constant 0 : i32
    %c0_i32_1 = arith.constant 0 : i32
    return %c0_i32, %c0_i32_0 : i32, i32
  }
  func.func @transform_4(%arg0: i32) -> (i32, i32) {
    %c0_i32 = arith.constant 0 : i32
    %c0_i32_0 = arith.constant 0 : i32
    %c0_i32_1 = arith.constant 0 : i32
    return %c0_i32, %c0_i32_0 : i32, i32
  }
  func.func @transform_5(%arg0: i32) -> (i32, i32) {
    %c0_i32 = arith.constant 0 : i32
    %c0_i32_0 = arith.constant 0 : i32
    return %arg0, %c0_i32 : i32, i32
  }
}

</mosaic_0001>

<llo_original>
// kernel: tpu_custom_call.1
$region0: #{tpu_custom_call.1}
  #allocation0 [shape = 'u32[]', space=smem, size = 0x4, offset = 0x4, fixed_abs, tag = 'smem constant byte address 0x4 - core index']
  #allocation1 [shape = 'u32[144,128]{1,0:T(1,128)}', space=vmem, size = 0x12000, scoped, tag = 'internal scratch']
  %s0 = inlined_call_operand.hbm [shape: bf16[16,32], index: 0, kind: input, shape index: {}]
  %s1 = inlined_call_operand.hbm [shape: bf16[32,32], index: 1, kind: input, shape index: {}]
  %s2 = inlined_call_operand.vmem [shape: f32[1,32], index: 2, kind: input, shape index: {}]
  %s3 = inlined_call_operand.hbm [shape: bf16[32,128], index: 3, kind: input, shape index: {}]
  %s4 = inlined_call_operand.vmem [shape: f32[1,128], index: 4, kind: input, shape index: {}]
  %s5 = inlined_call_operand.hbm [shape: f32[16,128], index: 5, kind: output, shape index: {}]
  %s6 = sld [smem:[#allocation0]]
  $region42: #{tpu_custom_call.1} parent=0
    _
  %s8 = ssub.s32 1, %s6
  %s9 = scalar_select 0, %s8, %s6
  $region1: #{tpu_custom_call.1} parent=0
    #allocation2 [shape = 'u8[4096]{0}', space=vmem, size = 0x1000, scoped, tag = 'input window, operand 0, single buffered']
    #allocation3 [shape = 's32[1]{0}', space=sflag, size = 0x4, scoped, tag = 'scoped memory for tpu_custom_call.1']
    #allocation4 [shape = 's32[1]{0}', space=sflag, size = 0x4, scoped, tag = 'scoped memory for tpu_custom_call.1']
    #allocation5 [shape = 'u8[8192]{0}', space=vmem, size = 0x2000, scoped, tag = 'input window, operand 1, single buffered']
    #allocation6 [shape = 's32[1]{0}', space=sflag, size = 0x4, scoped, tag = 'scoped memory for tpu_custom_call.1']
    #allocation7 [shape = 'u8[8192]{0}', space=vmem, size = 0x2000, scoped, tag = 'input window, operand 3, single buffered']
    #allocation8 [shape = 'u8[8192]{0}', space=vmem, size = 0x2000, scoped, tag = 'output window, operand 0, single buffered']
    %10 = vsyncpa [#allocation3], 0
    %11 = vsyncpa [#allocation6], 0
    %12 = vsyncpa [#allocation4], 0
    // Predicated region
    $region2: #{tpu_custom_call.1} parent=1 // pred_check
      _
    $region3: #{tpu_custom_call.1} parent=1 // pred_check_branch
      %14 = sbr.rel (0) target = $region5
    $region4: #{tpu_custom_call.1} parent=1 // pred_region
      %s16 = ssub.s32 128, 128
      %17 = vsyncadd [#allocation3], %s16
      %s18 = sshll.u32 [#allocation2], 4
      %s19 = int_to_ptr.vmem [resolvable:$true] %s18
      %24 = dma.hbm_to_vmem [thread:$0]  %s0, 128, %s19, [#allocation3], 64, 64, 4
    $region5: #{tpu_custom_call.1} parent=1 // pred_fallthru
      _
    // Predicated region
    $region6: #{tpu_custom_call.1} parent=1 // pred_check
      _
    $region7: #{tpu_custom_call.1} parent=1 // pred_check_branch
      %26 = sbr.rel (0) target = $region9
    $region8: #{tpu_custom_call.1} parent=1 // pred_region
      %s28 = ssub.s32 256, 256
      %29 = vsyncadd [#allocation6], %s28
      %s30 = sshll.u32 [#allocation5], 4
      %s31 = int_to_ptr.vmem [resolvable:$true] %s30
      %36 = dma.hbm_to_vmem [thread:$0]  %s1, 256, %s31, [#allocation6], 64, 64, 4
    $region9: #{tpu_custom_call.1} parent=1 // pred_fallthru
      _
    // Predicated region
    $region10: #{tpu_custom_call.1} parent=1 // pred_check
      _
    $region11: #{tpu_custom_call.1} parent=1 // pred_check_branch
      %38 = sbr.rel (0) target = $region13
    $region12: #{tpu_custom_call.1} parent=1 // pred_region
      _
    $region13: #{tpu_custom_call.1} parent=1 // pred_fallthru
      _
    // Predicated region
    $region14: #{tpu_custom_call.1} parent=1 // pred_check
      _
    $region15: #{tpu_custom_call.1} parent=1 // pred_check_branch
      %40 = sbr.rel (0) target = $region17
    $region16: #{tpu_custom_call.1} parent=1 // pred_region
      %s42 = ssub.s32 256, 256
      %43 = vsyncadd [#allocation6], %s42
      %s44 = sshll.u32 [#allocation7], 4
      %s45 = int_to_ptr.vmem [resolvable:$true] %s44
      %50 = dma.hbm_to_vmem [thread:$0]  %s3, 256, %s45, [#allocation6], 64, 64, 4
    $region17: #{tpu_custom_call.1} parent=1 // pred_fallthru
      _
    // Predicated region
    $region18: #{tpu_custom_call.1} parent=1 // pred_check
      _
    $region19: #{tpu_custom_call.1} parent=1 // pred_check_branch
      %52 = sbr.rel (0) target = $region21
    $region20: #{tpu_custom_call.1} parent=1 // pred_region
      _
    $region21: #{tpu_custom_call.1} parent=1 // pred_fallthru
      _
    // Predicated region
    $region22: #{tpu_custom_call.1} parent=1 // pred_check
      _
    $region23: #{tpu_custom_call.1} parent=1 // pred_check_branch
      %54 = sbr.rel (0) target = $region25
    $region24: #{tpu_custom_call.1} parent=1 // pred_region
      %55 = dma.done [#allocation3], 128
    $region25: #{tpu_custom_call.1} parent=1 // pred_fallthru
      _
    // Predicated region
    $region26: #{tpu_custom_call.1} parent=1 // pred_check
      _
    $region27: #{tpu_custom_call.1} parent=1 // pred_check_branch
      %57 = sbr.rel (0) target = $region29
    $region28: #{tpu_custom_call.1} parent=1 // pred_region
      %58 = dma.done [#allocation6], 256
    $region29: #{tpu_custom_call.1} parent=1 // pred_fallthru
      _
    // Predicated region
    $region30: #{tpu_custom_call.1} parent=1 // pred_check
      _
    $region31: #{tpu_custom_call.1} parent=1 // pred_check_branch
      %60 = sbr.rel (0) target = $region33
    $region32: #{tpu_custom_call.1} parent=1 // pred_region
      %61 = dma.done [#allocation6], 256
    $region33: #{tpu_custom_call.1} parent=1 // pred_fallthru
      _
    %v63 = vld [vmem:[#allocation2] sm:$0xf]
    %v64 = vld [vmem:[#allocation2 + $0x4] sm:$0xf]
    %v65 = vld [vmem:[#allocation5] sm:$0xf]
    %v66 = vld [vmem:[#allocation5 + $0x4] sm:$0xf]
    %v67 = vld [vmem:[#allocation5 + $0x8] sm:$0xf]
    %v68 = vld [vmem:[#allocation5 + $0xc] sm:$0xf]
    %v69 = vld [vmem:[%s2] sm:$0x1]
    %v71 = vlaneseq
    %v72 = vshrl.u32 %v71, 7
    %v73 = vsub.s32 0, %v72
    %v74 = vrot.slane %v69, %v73
    %v78 = vunpack.c.l.b16 %v63
    %v79 = vunpack.c.l.b16 %v64
    %v80 = vpack.c.b16 %v79, %v78
    %v85 = vunpack.c.l.b16 %v65
    %v86 = vunpack.c.l.b16 %v66
    %v87 = vunpack.c.l.b16 %v67
    %v88 = vunpack.c.l.b16 %v68
    %v89 = vpack.c.b16 %v86, %v85
    %v90 = vpack.c.b16 %v88, %v87
    %vm93 = vcmask 261120
    %v95 = vsel %vm93, %v80, 0
    %97 = vmatprep.subr.bf16.mxu0 0
    %98 = vmatpush1.bf16.msra.mxu0 %v89
    %99 = vmatprep.subr.bf16.mxu0 0
    %100 = vmatpush1.bf16.msra.mxu0 %v90
    %101 = vmatprep.subr.bf16.mxu0 0
    %102 = vmatpush1.bf16.msra.mxu0 0
    %103 = vmatprep.subr.bf16.mxu0 0
    %104 = vmatpush1.bf16.msra.mxu0 0
    %105 = vmatprep.subr.bf16.mxu0 0
    %106 = vmatpush1.bf16.msra.mxu0 0
    %107 = vmatprep.subr.bf16.mxu0 0
    %108 = vmatpush1.bf16.msra.mxu0 0
    %109 = vmatprep.subr.bf16.mxu0 0
    %110 = vmatpush1.bf16.msra.mxu0 0
    %111 = vmatprep.subr.bf16.mxu0 0
    %112 = vmatpush1.bf16.msra.mxu0 0
    %113 = vmatprep.subr.bf16.mxu0 0
    %114 = vmatpush1.bf16.msra.mxu0 0
    %115 = vmatprep.subr.bf16.mxu0 0
    %116 = vmatpush1.bf16.msra.mxu0 0
    %117 = vmatprep.subr.bf16.mxu0 0
    %118 = vmatpush1.bf16.msra.mxu0 0
    %119 = vmatprep.subr.bf16.mxu0 0
    %120 = vmatpush1.bf16.msra.mxu0 0
    %121 = vmatprep.subr.bf16.mxu0 0
    %122 = vmatpush1.bf16.msra.mxu0 0
    %123 = vmatprep.subr.bf16.mxu0 0
    %124 = vmatpush1.bf16.msra.mxu0 0
    %125 = vmatprep.subr.bf16.mxu0 0
    %126 = vmatpush1.bf16.msra.mxu0 0
    %127 = vmatprep.subr.bf16.mxu0 0
    %128 = vmatpush1.bf16.msra.mxu0 0
    %129 = vmatprep.mubr.bf16.mxu0 0
    %130 = vmatmul.mubr.bf16.gmra.mrb[0].mxu0 %v95
    %v131 = vpop.f32.mrb[0].mxu0
    %v132 = vadd.f32 %v74, %v131
    %v133 = vpop.f32.mrb[0].mxu0
    %v134 = vpop.f32.mrb[0].mxu0
    %v135 = vadd.f32 %v74, %v134
    %v136 = vpop.f32.mrb[0].mxu0
    %137 = vdwg.mxu0
    %v138 = vmax.f32 %v132, 0.0
    %v139 = vmax.f32 %v135, 0.0
    %v140 = vpack.c.bf16 %v139, %v138
    %v141 = vld [vmem:[#allocation7] sm:$0xf]
    %v142 = vld [vmem:[#allocation7 + $0x4] sm:$0xf]
    %v143 = vld [vmem:[#allocation7 + $0x8] sm:$0xf]
    %v144 = vld [vmem:[#allocation7 + $0xc] sm:$0xf]
    %v145 = vld [vmem:[%s4] sm:$0x1]
    %v147 = vlaneseq
    %v148 = vshrl.u32 %v147, 7
    %v149 = vsub.s32 0, %v148
    %v150 = vrot.slane %v145, %v149
    %v156 = vunpack.c.l.b16 %v141
    %v157 = vunpack.c.l.b16 %v142
    %v158 = vunpack.c.l.b16 %v143
    %v159 = vunpack.c.l.b16 %v144
    %v160 = vpack.c.b16 %v157, %v156
    %v161 = vpack.c.b16 %v159, %v158
    %v165 = vsel %vm93, %v140, 0
    %167 = vmatprep.subr.bf16.mxu0 0
    %168 = vmatpush1.bf16.msra.mxu0 %v160
    %169 = vmatprep.subr.bf16.mxu0 0
    %170 = vmatpush1.bf16.msra.mxu0 %v161
    %171 = vmatprep.subr.bf16.mxu0 0
    %172 = vmatpush1.bf16.msra.mxu0 0
    %173 = vmatprep.subr.bf16.mxu0 0
    %174 = vmatpush1.bf16.msra.mxu0 0
    %175 = vmatprep.subr.bf16.mxu0 0
    %176 = vmatpush1.bf16.msra.mxu0 0
    %177 = vmatprep.subr.bf16.mxu0 0
    %178 = vmatpush1.bf16.msra.mxu0 0
    %179 = vmatprep.subr.bf16.mxu0 0
    %180 = vmatpush1.bf16.msra.mxu0 0
    %181 = vmatprep.subr.bf16.mxu0 0
    %182 = vmatpush1.bf16.msra.mxu0 0
    %183 = vmatprep.subr.bf16.mxu0 0
    %184 = vmatpush1.bf16.msra.mxu0 0
    %185 = vmatprep.subr.bf16.mxu0 0
    %186 = vmatpush1.bf16.msra.mxu0 0
    %187 = vmatprep.subr.bf16.mxu0 0
    %188 = vmatpush1.bf16.msra.mxu0 0
    %189 = vmatprep.subr.bf16.mxu0 0
    %190 = vmatpush1.bf16.msra.mxu0 0
    %191 = vmatprep.subr.bf16.mxu0 0
    %192 = vmatpush1.bf16.msra.mxu0 0
    %193 = vmatprep.subr.bf16.mxu0 0
    %194 = vmatpush1.bf16.msra.mxu0 0
    %195 = vmatprep.subr.bf16.mxu0 0
    %196 = vmatpush1.bf16.msra.mxu0 0
    %197 = vmatprep.subr.bf16.mxu0 0
    %198 = vmatpush1.bf16.msra.mxu0 0
    %199 = vmatprep.mubr.bf16.mxu0 0
    %200 = vmatmul.mubr.bf16.gmra.mrb[0].mxu0 %v165
    %v201 = vpop.f32.mrb[0].mxu0
    %v202 = vadd.f32 %v150, %v201
    %v203 = vpop.f32.mrb[0].mxu0
    %v204 = vpop.f32.mrb[0].mxu0
    %v205 = vadd.f32 %v150, %v204
    %v206 = vpop.f32.mrb[0].mxu0
    %207 = vdwg.mxu0
    %208 = vst [vmem:[#allocation8] sm:$0xff] %v202
    %209 = vst [vmem:[#allocation8 + $0x8] sm:$0xff] %v205
    // Predicated region
    $region34: #{tpu_custom_call.1} parent=1 // pred_check
      _
    $region35: #{tpu_custom_call.1} parent=1 // pred_check_branch
      %211 = sbr.rel (0) target = $region37
    $region36: #{tpu_custom_call.1} parent=1 // pred_region
      %s213 = ssub.s32 256, 256
      %214 = vsyncadd [#allocation4], %s213
      %s215 = sshll.u32 [#allocation8], 4
      %s216 = int_to_ptr.vmem [resolvable:$true] %s215
      %221 = dma.vmem_to_hbm [thread:$0]  %s216, 256, %s5, [#allocation4], 128, 128, 8
    $region37: #{tpu_custom_call.1} parent=1 // pred_fallthru
      _
    // Predicated region
    $region38: #{tpu_custom_call.1} parent=1 // pred_check
      _
    $region39: #{tpu_custom_call.1} parent=1 // pred_check_branch
      %223 = sbr.rel (0) target = $region41
    $region40: #{tpu_custom_call.1} parent=1 // pred_region
      %224 = dma.done [#allocation4], 256
    $region41: #{tpu_custom_call.1} parent=1 // pred_fallthru
      _
    %225 = vsyncpa [#allocation3], 1
    %226 = vsyncpa [#allocation6], 1
    %227 = vsyncpa [#allocation4], 1

</llo_original>
